<compile_context>
chip_gen: v5e
topology: v5e:2x2
jax: 0.10.0
libtpu: 0.0.40
codegen_flags: <defaults>
</compile_context>

<pallas_src>
import functools

import jax
import jax.numpy as jnp
from jax.experimental import pallas as pl
from jax.experimental.pallas import tpu as pltpu

# ---- static config (mirrors SpectrogramAugmentation.__init__ args) ----------
FREQ_MASKS = 2
TIME_MASKS = 2
FREQ_WIDTH = 4
TIME_WIDTH = 4          # integer variant of time_width
RECT_MASKS = 2
RECT_TIME = 4
RECT_FREQ = 4

_MAX_TILE_T = 1024      # lanes per time tile (multiple of 128), sweep 512-2048


def _choose_tile_t(T):
    """Largest multiple of 128 that divides T, capped at _MAX_TILE_T.
    Falls back to the full time extent when T is not 128-aligned."""
    if T % 128 != 0:
        return T
    tile = min(T, _MAX_TILE_T)
    tile -= tile % 128
    while T % tile != 0:
        tile -= 128
    return tile


def _spec_aug_kernel(freq_ref, time_ref, rect_ref, x_ref, o_ref):
    """freq_ref : SMEM (B*2*FREQ_MASKS,)  flattened [start, end) pairs (freq axis)
       time_ref : SMEM (B*2*TIME_MASKS,)  flattened [start, end) pairs (time axis)
       rect_ref : SMEM (B*4*RECT_MASKS,)  flattened [f0, f1, t0, t1) quads (cutout)
       x_ref    : VMEM (D, TILE_T) slab for (batch b, time tile tb)
       o_ref    : VMEM (D, TILE_T) output slab
    """
    b = pl.program_id(0)
    tb = pl.program_id(1)
    d, tt = x_ref.shape
    t_off = tb * tt

    # 1-D index vectors; all band tests stay 1-D, only the final combine is 2-D.
    freq_idx = jax.lax.broadcasted_iota(jnp.int32, (d, 1), 0)            # (D, 1)
    time_idx = t_off + jax.lax.broadcasted_iota(jnp.int32, (1, tt), 1)   # (1, TILE_T)

    # SpecAugment: frequency (horizontal band) masks -> (D, 1) column
    cut_col = jnp.zeros((d, 1), dtype=jnp.bool_)
    fbase = b * (2 * FREQ_MASKS)
    for i in range(FREQ_MASKS):
        s = freq_ref[fbase + 2 * i]
        e = freq_ref[fbase + 2 * i + 1]
        cut_col |= (freq_idx >= s) & (freq_idx < e)

    # SpecAugment: time (vertical band) masks -> (1, TILE_T) row
    cut_row = jnp.zeros((1, tt), dtype=jnp.bool_)
    tbase = b * (2 * TIME_MASKS)
    for i in range(TIME_MASKS):
        s = time_ref[tbase + 2 * i]
        e = time_ref[tbase + 2 * i + 1]
        cut_row |= (time_idx >= s) & (time_idx < e)

    keep = jnp.logical_not(cut_col) & jnp.logical_not(cut_row)           # (D, TILE_T)

    # SpecCutout: rectangular masks (reuse 1-D compares, one 2-D combine each)
    rbase = b * (4 * RECT_MASKS)
    for i in range(RECT_MASKS):
        f0 = rect_ref[rbase + 4 * i]
        f1 = rect_ref[rbase + 4 * i + 1]
        t0 = rect_ref[rbase + 4 * i + 2]
        t1 = rect_ref[rbase + 4 * i + 3]
        f_in = (freq_idx >= f0) & (freq_idx < f1)                        # (D, 1)
        t_in = (time_idx >= t0) & (time_idx < t1)                        # (1, TILE_T)
        keep &= jnp.logical_not(f_in & t_in)

    x = x_ref[...]
    o_ref[...] = jnp.where(keep, x, jnp.zeros_like(x))


@jax.jit
def spectrogram_augmentation_kernel(features, freq_params, time_params, rect_params):
    """features: (B, D, T) float32.  *_params: flattened int32 SMEM scalars."""
    B, D, T = features.shape
    tile_t = _choose_tile_t(T)
    grid = (B, T // tile_t)

    grid_spec = pltpu.PrefetchScalarGridSpec(
        num_scalar_prefetch=3,
        grid=grid,
        in_specs=[
            pl.BlockSpec((None, D, tile_t), lambda b, t, fr, ti, rr: (b, 0, t)),
        ],
        out_specs=pl.BlockSpec((None, D, tile_t), lambda b, t, fr, ti, rr: (b, 0, t)),
    )
    return pl.pallas_call(
        _spec_aug_kernel,
        out_shape=jax.ShapeDtypeStruct((B, D, T), features.dtype),
        grid_spec=grid_spec,
        compiler_params=pltpu.CompilerParams(
            dimension_semantics=("parallel", "parallel")),
    )(freq_params, time_params, rect_params, features)


def sample_mask_params(key, batch, d, time, lengths):
    """Host-side deterministic sampling mirroring the PyTorch module's
    random.Random ranges (randint inclusive of both endpoints).  Stores
    [start, end) pairs, flattened to 1-D int32 arrays for cheap SMEM use."""
    k_fs, k_fw, k_ts, k_tw, k_rf0, k_rfw, k_rt0, k_rtw = jax.random.split(key, 8)

    # SpecAugment frequency masks: start in [0, d - freq_width], width in [0, freq_width]
    f_start = jax.random.randint(k_fs, (batch, FREQ_MASKS), 0, d - FREQ_WIDTH + 1)
    f_width = jax.random.randint(k_fw, (batch, FREQ_MASKS), 0, FREQ_WIDTH + 1)
    freq_params = jnp.stack([f_start, f_start + f_width], axis=-1).reshape(-1)

    # SpecAugment time masks: start in [0, max(1, length - time_width)], width in [0, time_width]
    hi = jnp.maximum(1, lengths - TIME_WIDTH)[:, None] + 1          # exclusive upper
    u = jax.random.uniform(k_ts, (batch, TIME_MASKS))
    t_start = jnp.floor(u * hi).astype(jnp.int32)
    t_width = jax.random.randint(k_tw, (batch, TIME_MASKS), 0, TIME_WIDTH + 1)
    time_params = jnp.stack([t_start, t_start + t_width], axis=-1).reshape(-1)

    # SpecCutout rectangles
    r_f0 = jax.random.randint(k_rf0, (batch, RECT_MASKS), 0, d - RECT_FREQ + 1)
    r_fw = jax.random.randint(k_rfw, (batch, RECT_MASKS), 0, RECT_FREQ + 1)
    r_t0 = jax.random.randint(k_rt0, (batch, RECT_MASKS), 0, time - RECT_TIME + 1)
    r_tw = jax.random.randint(k_rtw, (batch, RECT_MASKS), 0, RECT_TIME + 1)
    rect_params = jnp.stack([r_f0, r_f0 + r_fw, r_t0, r_t0 + r_tw],
                            axis=-1).reshape(-1)

    return (freq_params.astype(jnp.int32),
            time_params.astype(jnp.int32),
            rect_params.astype(jnp.int32))


def reference(features, freq_params, time_params, rect_params):
    """Pure-JAX reference of the same masking for a correctness check."""
    B, D, T = features.shape
    fp = freq_params.reshape(B, FREQ_MASKS, 2)
    tp = time_params.reshape(B, TIME_MASKS, 2)
    rp = rect_params.reshape(B, RECT_MASKS, 4)
    fi = jnp.arange(D)[None, :, None]
    ti = jnp.arange(T)[None, None, :]
    keep = jnp.ones((B, D, T), dtype=bool)
    for i in range(FREQ_MASKS):
        s = fp[:, i, 0][:, None, None]
        e = fp[:, i, 1][:, None, None]
        keep &= ~((fi >= s) & (fi < e))
    for i in range(TIME_MASKS):
        s = tp[:, i, 0][:, None, None]
        e = tp[:, i, 1][:, None, None]
        keep &= ~((ti >= s) & (ti < e))
    for i in range(RECT_MASKS):
        f0 = rp[:, i, 0][:, None, None]
        f1 = rp[:, i, 1][:, None, None]
        t0 = rp[:, i, 2][:, None, None]
        t1 = rp[:, i, 3][:, None, None]
        keep &= ~((fi >= f0) & (fi < f1) & (ti >= t0) & (ti < t1))
    return jnp.where(keep, features, 0.0)


if __name__ == "__main__":
    key = jax.random.PRNGKey(0)
    k_x, k_len, k_mask = jax.random.split(key, 3)

    B, D, T = 2, 16, 128   # (batch, d, time) — matches PyTorch (batch, d, time)
    features = jax.random.normal(k_x, (B, D, T), dtype=jnp.float32)
    feature_lengths = jax.random.randint(k_len, (B,), T // 2, T + 1).astype(jnp.int32)

    freq_p, time_p, rect_p = sample_mask_params(k_mask, B, D, T, feature_lengths)

    out = spectrogram_augmentation_kernel(features, freq_p, time_p, rect_p)
    out = jax.block_until_ready(out)

    ref = reference(features, freq_p, time_p, rect_p)
    assert out.shape == (B, D, T) and out.dtype == jnp.float32
    assert jnp.allclose(out, ref), "Pallas kernel mismatch vs reference"

    print("KERNEL_OK")
</pallas_src>

<mosaic_0001>
module attributes {stable_mosaic.version = 11 : i64} {
  func.func @_spec_aug_kernel(%arg0: i32, %arg1: i32, %arg2: memref<8xi32, #tpu.memory_space<smem>>, %arg3: memref<8xi32, #tpu.memory_space<smem>>, %arg4: memref<16xi32, #tpu.memory_space<smem>>, %arg5: memref<1x16x128xf32, #tpu.memory_space<vmem>>, %arg6: memref<1x16x128xf32, #tpu.memory_space<vmem>>) attributes {dimension_semantics = [#tpu.dimension_semantics<parallel>, #tpu.dimension_semantics<parallel>], iteration_bounds = array<i64: 2, 1>, scalar_prefetch = 3 : i64, scratch_operands = 0 : i64, tpu.core_type = #tpu.core_type<tc>, window_params = [{transform_indices = @transform_0, window_bounds = array<i64: 1, 16, 128>}, {transform_indices = @transform_1, window_bounds = array<i64: 1, 16, 128>}]} {
    %c128_i32 = arith.constant 128 : i32
    %0 = arith.muli %arg1, %c128_i32 : i32
    %1 = tpu.iota {dimensions = array<i32: 0>} : vector<16x1xi32>
    %2 = tpu.iota {dimensions = array<i32: 1>} : vector<1x128xi32>
    %3 = vector.broadcast %0 : i32 to vector<1x128xi32>
    %4 = arith.addi %3, %2 : vector<1x128xi32>
    %false = arith.constant false
    %5 = vector.broadcast %false : i1 to vector<16x1xi1>
    %c4_i32 = arith.constant 4 : i32
    %6 = arith.muli %arg0, %c4_i32 : i32
    %c0_i32 = arith.constant 0 : i32
    %7 = arith.addi %6, %c0_i32 : i32
    %8 = arith.index_cast %7 : i32 to index
    %9 = memref.load %arg2[%8] : memref<8xi32, #tpu.memory_space<smem>>
    %c0_i32_0 = arith.constant 0 : i32
    %10 = arith.addi %6, %c0_i32_0 : i32
    %c1_i32 = arith.constant 1 : i32
    %11 = arith.addi %10, %c1_i32 : i32
    %12 = arith.index_cast %11 : i32 to index
    %13 = memref.load %arg2[%12] : memref<8xi32, #tpu.memory_space<smem>>
    %14 = vector.broadcast %9 : i32 to vector<16x1xi32>
    %15 = arith.cmpi sge, %1, %14 : vector<16x1xi32>
    %16 = vector.broadcast %13 : i32 to vector<16x1xi32>
    %17 = arith.cmpi slt, %1, %16 : vector<16x1xi32>
    %18 = arith.andi %15, %17 : vector<16x1xi1>
    %19 = arith.ori %5, %18 : vector<16x1xi1>
    %c2_i32 = arith.constant 2 : i32
    %20 = arith.addi %6, %c2_i32 : i32
    %21 = arith.index_cast %20 : i32 to index
    %22 = memref.load %arg2[%21] : memref<8xi32, #tpu.memory_space<smem>>
    %c2_i32_1 = arith.constant 2 : i32
    %23 = arith.addi %6, %c2_i32_1 : i32
    %c1_i32_2 = arith.constant 1 : i32
    %24 = arith.addi %23, %c1_i32_2 : i32
    %25 = arith.index_cast %24 : i32 to index
    %26 = memref.load %arg2[%25] : memref<8xi32, #tpu.memory_space<smem>>
    %27 = vector.broadcast %22 : i32 to vector<16x1xi32>
    %28 = arith.cmpi sge, %1, %27 : vector<16x1xi32>
    %29 = vector.broadcast %26 : i32 to vector<16x1xi32>
    %30 = arith.cmpi slt, %1, %29 : vector<16x1xi32>
    %31 = arith.andi %28, %30 : vector<16x1xi1>
    %32 = arith.ori %19, %31 : vector<16x1xi1>
    %false_3 = arith.constant false
    %33 = vector.broadcast %false_3 : i1 to vector<1x128xi1>
    %c4_i32_4 = arith.constant 4 : i32
    %34 = arith.muli %arg0, %c4_i32_4 : i32
    %c0_i32_5 = arith.constant 0 : i32
    %35 = arith.addi %34, %c0_i32_5 : i32
    %36 = arith.index_cast %35 : i32 to index
    %37 = memref.load %arg3[%36] : memref<8xi32, #tpu.memory_space<smem>>
    %c0_i32_6 = arith.constant 0 : i32
    %38 = arith.addi %34, %c0_i32_6 : i32
    %c1_i32_7 = arith.constant 1 : i32
    %39 = arith.addi %38, %c1_i32_7 : i32
    %40 = arith.index_cast %39 : i32 to index
    %41 = memref.load %arg3[%40] : memref<8xi32, #tpu.memory_space<smem>>
    %42 = vector.broadcast %37 : i32 to vector<1x128xi32>
    %43 = arith.cmpi sge, %4, %42 : vector<1x128xi32>
    %44 = vector.broadcast %41 : i32 to vector<1x128xi32>
    %45 = arith.cmpi slt, %4, %44 : vector<1x128xi32>
    %46 = arith.andi %43, %45 : vector<1x128xi1>
    %47 = arith.ori %33, %46 : vector<1x128xi1>
    %c2_i32_8 = arith.constant 2 : i32
    %48 = arith.addi %34, %c2_i32_8 : i32
    %49 = arith.index_cast %48 : i32 to index
    %50 = memref.load %arg3[%49] : memref<8xi32, #tpu.memory_space<smem>>
    %c2_i32_9 = arith.constant 2 : i32
    %51 = arith.addi %34, %c2_i32_9 : i32
    %c1_i32_10 = arith.constant 1 : i32
    %52 = arith.addi %51, %c1_i32_10 : i32
    %53 = arith.index_cast %52 : i32 to index
    %54 = memref.load %arg3[%53] : memref<8xi32, #tpu.memory_space<smem>>
    %55 = vector.broadcast %50 : i32 to vector<1x128xi32>
    %56 = arith.cmpi sge, %4, %55 : vector<1x128xi32>
    %57 = vector.broadcast %54 : i32 to vector<1x128xi32>
    %58 = arith.cmpi slt, %4, %57 : vector<1x128xi32>
    %59 = arith.andi %56, %58 : vector<1x128xi1>
    %60 = arith.ori %47, %59 : vector<1x128xi1>
    %cst = arith.constant dense<true> : vector<16x1xi1>
    %61 = arith.xori %32, %cst : vector<16x1xi1>
    %cst_11 = arith.constant dense<true> : vector<1x128xi1>
    %62 = arith.xori %60, %cst_11 : vector<1x128xi1>
    %63 = vector.broadcast %61 : vector<16x1xi1> to vector<16x128xi1>
    %64 = vector.broadcast %62 : vector<1x128xi1> to vector<16x128xi1>
    %65 = arith.andi %63, %64 : vector<16x128xi1>
    %c8_i32 = arith.constant 8 : i32
    %66 = arith.muli %arg0, %c8_i32 : i32
    %c0_i32_12 = arith.constant 0 : i32
    %67 = arith.addi %66, %c0_i32_12 : i32
    %68 = arith.index_cast %67 : i32 to index
    %69 = memref.load %arg4[%68] : memref<16xi32, #tpu.memory_space<smem>>
    %c0_i32_13 = arith.constant 0 : i32
    %70 = arith.addi %66, %c0_i32_13 : i32
    %c1_i32_14 = arith.constant 1 : i32
    %71 = arith.addi %70, %c1_i32_14 : i32
    %72 = arith.index_cast %71 : i32 to index
    %73 = memref.load %arg4[%72] : memref<16xi32, #tpu.memory_space<smem>>
    %c0_i32_15 = arith.constant 0 : i32
    %74 = arith.addi %66, %c0_i32_15 : i32
    %c2_i32_16 = arith.constant 2 : i32
    %75 = arith.addi %74, %c2_i32_16 : i32
    %76 = arith.index_cast %75 : i32 to index
    %77 = memref.load %arg4[%76] : memref<16xi32, #tpu.memory_space<smem>>
    %c0_i32_17 = arith.constant 0 : i32
    %78 = arith.addi %66, %c0_i32_17 : i32
    %c3_i32 = arith.constant 3 : i32
    %79 = arith.addi %78, %c3_i32 : i32
    %80 = arith.index_cast %79 : i32 to index
    %81 = memref.load %arg4[%80] : memref<16xi32, #tpu.memory_space<smem>>
    %82 = vector.broadcast %69 : i32 to vector<16x1xi32>
    %83 = arith.cmpi sge, %1, %82 : vector<16x1xi32>
    %84 = vector.broadcast %73 : i32 to vector<16x1xi32>
    %85 = arith.cmpi slt, %1, %84 : vector<16x1xi32>
    %86 = arith.andi %83, %85 : vector<16x1xi1>
    %87 = vector.broadcast %77 : i32 to vector<1x128xi32>
    %88 = arith.cmpi sge, %4, %87 : vector<1x128xi32>
    %89 = vector.broadcast %81 : i32 to vector<1x128xi32>
    %90 = arith.cmpi slt, %4, %89 : vector<1x128xi32>
    %91 = arith.andi %88, %90 : vector<1x128xi1>
    %92 = vector.broadcast %86 : vector<16x1xi1> to vector<16x128xi1>
    %93 = vector.broadcast %91 : vector<1x128xi1> to vector<16x128xi1>
    %94 = arith.andi %92, %93 : vector<16x128xi1>
    %cst_18 = arith.constant dense<true> : vector<16x128xi1>
    %95 = arith.xori %94, %cst_18 : vector<16x128xi1>
    %96 = arith.andi %65, %95 : vector<16x128xi1>
    %c4_i32_19 = arith.constant 4 : i32
    %97 = arith.addi %66, %c4_i32_19 : i32
    %98 = arith.index_cast %97 : i32 to index
    %99 = memref.load %arg4[%98] : memref<16xi32, #tpu.memory_space<smem>>
    %c4_i32_20 = arith.constant 4 : i32
    %100 = arith.addi %66, %c4_i32_20 : i32
    %c1_i32_21 = arith.constant 1 : i32
    %101 = arith.addi %100, %c1_i32_21 : i32
    %102 = arith.index_cast %101 : i32 to index
    %103 = memref.load %arg4[%102] : memref<16xi32, #tpu.memory_space<smem>>
    %c4_i32_22 = arith.constant 4 : i32
    %104 = arith.addi %66, %c4_i32_22 : i32
    %c2_i32_23 = arith.constant 2 : i32
    %105 = arith.addi %104, %c2_i32_23 : i32
    %106 = arith.index_cast %105 : i32 to index
    %107 = memref.load %arg4[%106] : memref<16xi32, #tpu.memory_space<smem>>
    %c4_i32_24 = arith.constant 4 : i32
    %108 = arith.addi %66, %c4_i32_24 : i32
    %c3_i32_25 = arith.constant 3 : i32
    %109 = arith.addi %108, %c3_i32_25 : i32
    %110 = arith.index_cast %109 : i32 to index
    %111 = memref.load %arg4[%110] : memref<16xi32, #tpu.memory_space<smem>>
    %112 = vector.broadcast %99 : i32 to vector<16x1xi32>
    %113 = arith.cmpi sge, %1, %112 : vector<16x1xi32>
    %114 = vector.broadcast %103 : i32 to vector<16x1xi32>
    %115 = arith.cmpi slt, %1, %114 : vector<16x1xi32>
    %116 = arith.andi %113, %115 : vector<16x1xi1>
    %117 = vector.broadcast %107 : i32 to vector<1x128xi32>
    %118 = arith.cmpi sge, %4, %117 : vector<1x128xi32>
    %119 = vector.broadcast %111 : i32 to vector<1x128xi32>
    %120 = arith.cmpi slt, %4, %119 : vector<1x128xi32>
    %121 = arith.andi %118, %120 : vector<1x128xi1>
    %122 = vector.broadcast %116 : vector<16x1xi1> to vector<16x128xi1>
    %123 = vector.broadcast %121 : vector<1x128xi1> to vector<16x128xi1>
    %124 = arith.andi %122, %123 : vector<16x128xi1>
    %cst_26 = arith.constant dense<true> : vector<16x128xi1>
    %125 = arith.xori %124, %cst_26 : vector<16x128xi1>
    %126 = arith.andi %96, %125 : vector<16x128xi1>
    %c0 = arith.constant 0 : index
    %c0_27 = arith.constant 0 : index
    %c0_28 = arith.constant 0 : index
    %127 = vector.load %arg5[%c0, %c0_27, %c0_28] : memref<1x16x128xf32, #tpu.memory_space<vmem>>, vector<1x16x128xf32>
    %128 = vector.shape_cast %127 : vector<1x16x128xf32> to vector<16x128xf32>
    %cst_29 = arith.constant 0.000000e+00 : f32
    %129 = vector.broadcast %cst_29 : f32 to vector<16x128xf32>
    %130 = arith.select %126, %128, %129 : vector<16x128xi1>, vector<16x128xf32>
    %c0_30 = arith.constant 0 : index
    %c0_31 = arith.constant 0 : index
    %c0_32 = arith.constant 0 : index
    %131 = vector.load %arg6[%c0_30, %c0_31, %c0_32] : memref<1x16x128xf32, #tpu.memory_space<vmem>>, vector<1x16x128xf32>
    %132 = vector.shape_cast %131 : vector<1x16x128xf32> to vector<16x128xf32>
    %133 = vector.shape_cast %130 : vector<16x128xf32> to vector<1x16x128xf32>
    tpu.vector_store %arg6[%c0_30, %c0_31, %c0_32], %133 {strides = array<i32>} : memref<1x16x128xf32, #tpu.memory_space<vmem>>, vector<1x16x128xf32>,
    return
  }
  func.func @transform_0(%arg0: i32, %arg1: i32, %arg2: memref<8xi32, #tpu.memory_space<smem>>, %arg3: memref<8xi32, #tpu.memory_space<smem>>, %arg4: memref<16xi32, #tpu.memory_space<smem>>) -> (i32, i32, i32) {
    %c0_i32 = arith.constant 0 : i32
    %c0_i32_0 = arith.constant 0 : i32
    return %arg0, %c0_i32, %arg1 : i32, i32, i32
  }
  func.func @transform_1(%arg0: i32, %arg1: i32, %arg2: memref<8xi32, #tpu.memory_space<smem>>, %arg3: memref<8xi32, #tpu.memory_space<smem>>, %arg4: memref<16xi32, #tpu.memory_space<smem>>) -> (i32, i32, i32) {
    %c0_i32 = arith.constant 0 : i32
    %c0_i32_0 = arith.constant 0 : i32
    return %arg0, %c0_i32, %arg1 : i32, i32, i32
  }
}

</mosaic_0001>

<llo_original>
// kernel: spectrogram_augmentation_kernel.1
$region0: #{spectrogram_augmentation_kernel.1}
  #allocation0 [shape = 'u32[]', space=smem, size = 0x4, offset = 0x4, fixed_abs, tag = 'smem constant byte address 0x4 - core index']
  #allocation1 [shape = 'u32[72,128]{1,0:T(1,128)}', space=vmem, size = 0x9000, scoped, tag = 'internal scratch']
  #allocation2 [shape = 's32[1]{0}', space=sflag, size = 0x4, scoped, tag = 'scoped memory for spectrogram_augmentation_kernel.1']
  #allocation3 [shape = 'u8[512]{0}', space=smem, size = 0x200, scoped, tag = 'prefetched SMEM operand 0']
  #allocation4 [shape = 'u8[512]{0}', space=smem, size = 0x200, scoped, tag = 'prefetched SMEM operand 1']
  #allocation5 [shape = 'u8[512]{0}', space=smem, size = 0x200, scoped, tag = 'prefetched SMEM operand 2']
  %s0 = inlined_call_operand.hbm [shape: s32[8], index: 0, kind: input, shape index: {}]
  %s1 = inlined_call_operand.vmem [shape: s32[8], index: 1, kind: input, shape index: {}]
  %s2 = inlined_call_operand.vmem [shape: s32[16], index: 2, kind: input, shape index: {}]
  %s3 = inlined_call_operand.hbm [shape: f32[2,16,128], index: 3, kind: input, shape index: {}]
  %s4 = inlined_call_operand.hbm [shape: f32[2,16,128], index: 4, kind: output, shape index: {}]
  %s5 = sld [smem:[#allocation0]]
  $region41: #{spectrogram_augmentation_kernel.1} parent=0
    _
  %s7 = ssub.s32 1, %s5
  %s8 = scalar_select 0, %s7, %s5
  %s10 = sshll.u32 %s0, 4
  %s11 = int_to_ptr.hbm [resolvable:$true] %s10
  %13 = dma.hbm_to_smem %s11, 16, [#allocation3], [#allocation2]
  %s15 = sshll.u32 %s1, 4
  %s16 = int_to_ptr.vmem [resolvable:$true] %s15
  %18 = dma.vmem_to_smem %s16, 16, [#allocation4], [#allocation2]
  %s20 = sshll.u32 %s2, 4
  %s21 = int_to_ptr.vmem [resolvable:$true] %s20
  %23 = dma.vmem_to_smem %s21, 16, [#allocation5], [#allocation2]
  %25 = dma.done [#allocation2], 48
  %26 = sfence
  $region1: #{spectrogram_augmentation_kernel.1} parent=0
    #allocation6 [shape = 'u8[16384]{0}', space=vmem, size = 0x4000, scoped, tag = 'input window, operand 3']
    #allocation7 [shape = 's32[2]{0}', space=sflag, size = 0x8, scoped, tag = 'scoped memory for spectrogram_augmentation_kernel.1']
    #allocation8 [shape = 's32[2]{0}', space=sflag, size = 0x8, scoped, tag = 'scoped memory for spectrogram_augmentation_kernel.1']
    #allocation9 [shape = 'u8[16384]{0}', space=vmem, size = 0x4000, scoped, tag = 'output window, operand 0']
    %27 = vsyncpa [#allocation7], 0
    %s28 = scalar_lea.sflag [#allocation7], 1
    %29 = vsyncpa %s28, 0
    %30 = vsyncpa [#allocation8], 0
    %s31 = scalar_lea.sflag [#allocation8], 1
    %32 = vsyncpa %s31, 0
    loop: start=0, step=1, limit=4
    $region2: #{spectrogram_augmentation_kernel.1} parent=1 // loop_pre_header
      _
    $region3: #{spectrogram_augmentation_kernel.1} parent=1 // loop_header
      %s34 = sphi 0, %s38
      %p35 = scmp.ge.s32.totalorder %s34, 4
      %s41 = sphi 0, %s53
      %s42 = sphi 0, %s49
      %s43 = sphi 0, %s41
      %s44 = sphi 0, %s42
      %s45 = sphi 0, %s43
      %s46 = sphi 0, %s44
      %s58 = sphi 0, %s60
      %s61 = sphi 0, %s58
      %s62 = sphi 0, %s61
      %s78 = sphi 0, %s62
      %s86 = sphi 0, %s88
      %s89 = sphi 0, %s86
      %s90 = sphi 0, %s89
      %s106 = sphi 0, %s90
    $region4: #{spectrogram_augmentation_kernel.1} parent=1 // loop_header_branch
      %37 = sbr.rel (%p35) target = $region8
    $region5: #{spectrogram_augmentation_kernel.1} parent=1 // loop_body
      %s39 = ssub.s32 %s34, 1
      %s40 = ssub.s32 %s34, 2
      %s47 = sadd.s32 1, %s42
      %p48 = scmp.ge.s32.totalorder %s47, 1
      %s49 = scalar_select %p48, 0, %s47
      %s50 = sadd.s32 1, %s41
      %s51 = scalar_select %p48, %s50, %s41
      %p52 = scmp.ge.s32.totalorder %s51, 2
      %s53 = scalar_select %p52, 0, %s51
      %s54 = ssub.s32 %s41, %s53
      %s55 = ssub.s32 %s42, %s49
      %s56 = sor.u32 %s54, %s55
      %p57 = scmp.eq.s32.totalorder %s56, 0
      %s59 = sadd.s32 %s58, 1
      %s60 = scalar_select %p57, %s58, %s59
      %p63 = pneg %p57
      %p64 = scmp.eq.s32.totalorder %s34, 1
      %p65 = por %p63, %p64
      %p66 = scmp.ne.s32.totalorder %s58, %s61
      %p67 = scmp.eq.s32.totalorder %s34, 0
      %p68 = por %p66, %p67
      %p69 = scmp.ne.s32.totalorder %s58, %s61
      %p70 = scmp.eq.s32.totalorder %s39, 1
      %p71 = por %p69, %p70
      %p72 = scmp.ne.s32.totalorder %s61, %s62
      %p73 = scmp.eq.s32.totalorder %s39, 0
      %p74 = por %p72, %p73
      %p75 = scmp.ne.s32.totalorder %s61, %s62
      %p76 = scmp.eq.s32.totalorder %s40, 1
      %p77 = por %p75, %p76
      %p79 = scmp.ne.s32.totalorder %s62, %s78
      %p80 = scmp.eq.s32.totalorder %s40, 0
      %p81 = por %p79, %p80
      %s82 = ssub.s32 %s41, %s53
      %s83 = ssub.s32 %s42, %s49
      %s84 = sor.u32 %s82, %s83
      %p85 = scmp.eq.s32.totalorder %s84, 0
      %s87 = sadd.s32 %s86, 1
      %s88 = scalar_select %p85, %s86, %s87
      %p91 = pneg %p85
      %p92 = scmp.eq.s32.totalorder %s34, 1
      %p93 = por %p91, %p92
      %p94 = scmp.ne.s32.totalorder %s86, %s89
      %p95 = scmp.eq.s32.totalorder %s34, 0
      %p96 = por %p94, %p95
      %p97 = scmp.ne.s32.totalorder %s86, %s89
      %p98 = scmp.eq.s32.totalorder %s39, 1
      %p99 = por %p97, %p98
      %p100 = scmp.ne.s32.totalorder %s89, %s90
      %p101 = scmp.eq.s32.totalorder %s39, 0
      %p102 = por %p100, %p101
      %p103 = scmp.ne.s32.totalorder %s89, %s90
      %p104 = scmp.eq.s32.totalorder %s40, 1
      %p105 = por %p103, %p104
      %p107 = scmp.ne.s32.totalorder %s90, %s106
      %p108 = scmp.eq.s32.totalorder %s40, 0
      %p109 = por %p107, %p108
      %p110 = scmp.le.s32.totalorder 1, %s34
      %p111 = scmp.lt.s32.totalorder %s34, 3
      %p112 = pnand %p110, %p111
      %p113 = pneg %p112
      // Predicated region
      $region9: #{spectrogram_augmentation_kernel.1} parent=5 // pred_check
        _
      $region10: #{spectrogram_augmentation_kernel.1} parent=5 // pred_check_branch
        %115 = sbr.rel (%p112) target = $region12
      $region11: #{spectrogram_augmentation_kernel.1} parent=5 // pred_region
        %s116 = ssub.s32 %s34, 1
      $region12: #{spectrogram_augmentation_kernel.1} parent=5 // pred_fallthru
        _
      %p117 = scmp.lt.s32.totalorder %s34, 2
      // Predicated region
      $region13: #{spectrogram_augmentation_kernel.1} parent=5 // pred_check
        %p118 = pneg %p117
      $region14: #{spectrogram_augmentation_kernel.1} parent=5 // pred_check_branch
        %120 = sbr.rel (%p118) target = $region16
      $region15: #{spectrogram_augmentation_kernel.1} parent=5 // pred_region
        // Predicated region
        $region17: #{spectrogram_augmentation_kernel.1} parent=15 // pred_check
          %p121 = pneg %p68
        $region18: #{spectrogram_augmentation_kernel.1} parent=15 // pred_check_branch
          %123 = sbr.rel (%p121) target = $region20
        $region19: #{spectrogram_augmentation_kernel.1} parent=15 // pred_region
          %s124 = sand.u32 %s58, 1
          %s125 = scalar_lea.sflag [#allocation7], %s124
          %s126 = sand.u32 %s58, 1
          %s127 = smul.addr %s126, 16
          %s128 = scalar_lea.vmem [#allocation6], %s127
          %130 = vsyncadd %s125, 0
          %s131 = smul.addr %s41, 2
          %s132 = sadd.s32 %s42, %s131
          %s133 = smul.addr %s132, 8
          %s134 = scalar_lea.hbm %s3, %s133
          %s135 = sshll.u32 %s134, 4
          %s136 = int_to_ptr.hbm [resolvable:$true] %s135
          %s137 = sshll.u32 %s128, 4
          %s138 = int_to_ptr.vmem [resolvable:$true] %s137
          %143 = dma.hbm_to_vmem [thread:$0]  %s136, 256, %s138, %s125, 128, 128, 8
        $region20: #{spectrogram_augmentation_kernel.1} parent=15 // pred_fallthru
          _
      $region16: #{spectrogram_augmentation_kernel.1} parent=5 // pred_fallthru
        _
      %p144 = scmp.le.s32.totalorder 1, %s34
      %p145 = scmp.lt.s32.totalorder %s34, 3
      %p146 = pnand %p144, %p145
      %p147 = pneg %p146
      // Predicated region
      $region21: #{spectrogram_augmentation_kernel.1} parent=5 // pred_check
        _
      $region22: #{spectrogram_augmentation_kernel.1} parent=5 // pred_check_branch
        %149 = sbr.rel (%p146) target = $region24
      $region23: #{spectrogram_augmentation_kernel.1} parent=5 // pred_region
        %s150 = ssub.s32 %s34, 1
        %s151 = sand.u32 %s61, 1
        %s152 = scalar_lea.sflag [#allocation7], %s151
        %s153 = sand.u32 %s61, 1
        %s154 = smul.addr %s153, 16
        %s155 = scalar_lea.vmem [#allocation6], %s154
        // Predicated region
        $region25: #{spectrogram_augmentation_kernel.1} parent=23 // pred_check
          %p156 = pneg %p74
        $region26: #{spectrogram_augmentation_kernel.1} parent=23 // pred_check_branch
          %158 = sbr.rel (%p156) target = $region28
        $region27: #{spectrogram_augmentation_kernel.1} parent=23 // pred_region
          %160 = dma.done %s152, 256
        $region28: #{spectrogram_augmentation_kernel.1} parent=23 // pred_fallthru
          _
        %s161 = sand.u32 %s61, 1
        %s162 = scalar_lea.sflag [#allocation7], %s161
        %s163 = sand.u32 %s61, 1
        %s164 = smul.addr %s163, 16
        %s165 = scalar_lea.vmem [#allocation6], %s164
        %p166 = pneg %p74
        %p167 = pneg %p71
        %p168 = pneg %p102
        %p169 = pneg %p99
        %s170 = sand.u32 %s89, 1
        %s171 = scalar_lea.sflag [#allocation8], %s170
        %s172 = sand.u32 %s89, 1
        %s173 = smul.addr %s172, 16
        %s174 = scalar_lea.vmem [#allocation9], %s173
        %s175 = smul.u32 %s44, 128
        %v176 = vlaneseq
        %v177 = vshrl.u32 %v176, 7
        %v178 = vadd.s32 %v177, 8
        %v179 = vlaneseq
        %v180 = vand.u32 %v179, 127
        %v181 = vstv %s175
        %v182 = vadd.s32 %v181, %v180
        %s183 = smul.u32 %s43, 4
        %s184 = sld [smem:[#allocation3 + %s183]]
        %s185 = sadd.s32 %s183, 1
        %s186 = sld [smem:[#allocation3 + %s185]]
        %v187 = vstv %s184
        %vm188 = vcmp.ge.s32.totalorder %v177, %v187
        %vm189 = vcmp.ge.s32.totalorder %v178, %v187
        %v190 = vstv %s186
        %vm191 = vcmp.lt.s32.totalorder %v177, %v190
        %vm192 = vcmp.lt.s32.totalorder %v178, %v190
        %vm193 = vmand %vm188, %vm191
        %vm194 = vmand %vm189, %vm192
        %s195 = sadd.s32 %s183, 2
        %s196 = sld [smem:[#allocation3 + %s195]]
        %s197 = sadd.s32 %s183, 3
        %s198 = sld [smem:[#allocation3 + %s197]]
        %v199 = vstv %s196
        %vm200 = vcmp.ge.s32.totalorder %v177, %v199
        %vm201 = vcmp.ge.s32.totalorder %v178, %v199
        %v202 = vstv %s198
        %vm203 = vcmp.lt.s32.totalorder %v177, %v202
        %vm204 = vcmp.lt.s32.totalorder %v178, %v202
        %vm205 = vmand %vm200, %vm203
        %vm206 = vmand %vm201, %vm204
        %vm207 = vmor %vm193, %vm205
        %vm208 = vmor %vm194, %vm206
        %s209 = sld [smem:[#allocation4 + %s183]]
        %s210 = sld [smem:[#allocation4 + %s185]]
        %v211 = vstv %s209
        %vm212 = vcmp.ge.s32.totalorder %v182, %v211
        %v213 = vstv %s210
        %vm214 = vcmp.lt.s32.totalorder %v182, %v213
        %vm215 = vmand %vm212, %vm214
        %s216 = sld [smem:[#allocation4 + %s195]]
        %s217 = sld [smem:[#allocation4 + %s197]]
        %v218 = vstv %s216
        %vm219 = vcmp.ge.s32.totalorder %v182, %v218
        %v220 = vstv %s217
        %vm221 = vcmp.lt.s32.totalorder %v182, %v220
        %vm222 = vmand %vm219, %vm221
        %vm223 = vmor %vm215, %vm222
        %vm224 = vmxor %vm207, 1
        %vm225 = vmxor %vm208, 1
        %vm226 = vmxor %vm223, 1
        %v227 = vsel %vm224, 1, 0
        %v228 = vsel %vm225, 1, 0
        %vm229 = vcmp.eq.s32.totalorder %v227, 1
        %vm230 = vcmp.eq.s32.totalorder %v228, 1
        %v231 = vsel %vm226, 1, 0
        %vm232 = vcmp.eq.s32.totalorder %v231, 1
        %vm233 = vmand %vm229, %vm232
        %vm234 = vmand %vm230, %vm232
        %s235 = smul.u32 %s43, 8
        %s236 = sld [smem:[#allocation5 + %s235]]
        %s237 = sadd.s32 %s235, 1
        %s238 = sld [smem:[#allocation5 + %s237]]
        %s239 = sadd.s32 %s235, 2
        %s240 = sld [smem:[#allocation5 + %s239]]
        %s241 = sadd.s32 %s235, 3
        %s242 = sld [smem:[#allocation5 + %s241]]
        %v243 = vstv %s236
        %vm244 = vcmp.ge.s32.totalorder %v177, %v243
        %vm245 = vcmp.ge.s32.totalorder %v178, %v243
        %v246 = vstv %s238
        %vm247 = vcmp.lt.s32.totalorder %v177, %v246
        %vm248 = vcmp.lt.s32.totalorder %v178, %v246
        %vm249 = vmand %vm244, %vm247
        %vm250 = vmand %vm245, %vm248
        %v251 = vstv %s240
        %vm252 = vcmp.ge.s32.totalorder %v182, %v251
        %v253 = vstv %s242
        %vm254 = vcmp.lt.s32.totalorder %v182, %v253
        %vm255 = vmand %vm252, %vm254
        %v256 = vsel %vm249, 1, 0
        %v257 = vsel %vm250, 1, 0
        %vm258 = vcmp.eq.s32.totalorder %v256, 1
        %vm259 = vcmp.eq.s32.totalorder %v257, 1
        %v260 = vsel %vm255, 1, 0
        %vm261 = vcmp.eq.s32.totalorder %v260, 1
        %vm262 = vmand %vm258, %vm261
        %vm263 = vmand %vm259, %vm261
        %vm264 = vmxor %vm262, 1
        %vm265 = vmxor %vm263, 1
        %vm266 = vmand %vm233, %vm264
        %vm267 = vmand %vm234, %vm265
        %s268 = sadd.s32 %s235, 4
        %s269 = sld [smem:[#allocation5 + %s268]]
        %s270 = sadd.s32 %s235, 5
        %s271 = sld [smem:[#allocation5 + %s270]]
        %s272 = sadd.s32 %s235, 6
        %s273 = sld [smem:[#allocation5 + %s272]]
        %s274 = sadd.s32 %s235, 7
        %s275 = sld [smem:[#allocation5 + %s274]]
        %v276 = vstv %s269
        %vm277 = vcmp.ge.s32.totalorder %v177, %v276
        %vm278 = vcmp.ge.s32.totalorder %v178, %v276
        %v279 = vstv %s271
        %vm280 = vcmp.lt.s32.totalorder %v177, %v279
        %vm281 = vcmp.lt.s32.totalorder %v178, %v279
        %vm282 = vmand %vm277, %vm280
        %vm283 = vmand %vm278, %vm281
        %v284 = vstv %s273
        %vm285 = vcmp.ge.s32.totalorder %v182, %v284
        %v286 = vstv %s275
        %vm287 = vcmp.lt.s32.totalorder %v182, %v286
        %vm288 = vmand %vm285, %vm287
        %v289 = vsel %vm282, 1, 0
        %v290 = vsel %vm283, 1, 0
        %vm291 = vcmp.eq.s32.totalorder %v289, 1
        %vm292 = vcmp.eq.s32.totalorder %v290, 1
        %v293 = vsel %vm288, 1, 0
        %vm294 = vcmp.eq.s32.totalorder %v293, 1
        %vm295 = vmand %vm291, %vm294
        %vm296 = vmand %vm292, %vm294
        %vm297 = vmxor %vm295, 1
        %vm298 = vmxor %vm296, 1
        %vm299 = vmand %vm266, %vm297
        %vm300 = vmand %vm267, %vm298
        %v301 = vld [vmem:[%s155] sm:$0xff]
        %v302 = vld [vmem:[%s155 + $0x8] sm:$0xff]
        %v303 = vsel %vm299, %v301, 0.0
        %v304 = vsel %vm300, %v302, 0.0
        %305 = vst [vmem:[%s174] sm:$0xff] %v303
        %306 = vst [vmem:[%s174 + $0x8] sm:$0xff] %v304
        %s307 = sand.u32 %s89, 1
        %s308 = scalar_lea.sflag [#allocation8], %s307
        %s309 = sand.u32 %s89, 1
        %s310 = smul.addr %s309, 16
        %s311 = scalar_lea.vmem [#allocation9], %s310
        // Predicated region
        $region29: #{spectrogram_augmentation_kernel.1} parent=23 // pred_check
          %p312 = pneg %p99
        $region30: #{spectrogram_augmentation_kernel.1} parent=23 // pred_check_branch
          %314 = sbr.rel (%p312) target = $region32
        $region31: #{spectrogram_augmentation_kernel.1} parent=23 // pred_region
          %316 = vsyncadd %s308, 0
          %s317 = smul.addr %s43, 2
          %s318 = sadd.s32 %s44, %s317
          %s319 = smul.addr %s318, 8
          %s320 = scalar_lea.hbm %s4, %s319
          %s321 = sshll.u32 %s311, 4
          %s322 = int_to_ptr.vmem [resolvable:$true] %s321
          %s323 = sshll.u32 %s320, 4
          %s324 = int_to_ptr.hbm [resolvable:$true] %s323
          %329 = dma.vmem_to_hbm [thread:$0]  %s322, 256, %s324, %s308, 128, 128, 8
        $region32: #{spectrogram_augmentation_kernel.1} parent=23 // pred_fallthru
          _
      $region24: #{spectrogram_augmentation_kernel.1} parent=5 // pred_fallthru
        _
      %p330 = scmp.le.s32.totalorder 2, %s34
      // Predicated region
      $region33: #{spectrogram_augmentation_kernel.1} parent=5 // pred_check
        %p331 = pneg %p330
      $region34: #{spectrogram_augmentation_kernel.1} parent=5 // pred_check_branch
        %333 = sbr.rel (%p331) target = $region36
      $region35: #{spectrogram_augmentation_kernel.1} parent=5 // pred_region
        %s334 = ssub.s32 %s34, 2
        // Predicated region
        $region37: #{spectrogram_augmentation_kernel.1} parent=35 // pred_check
          %p335 = pneg %p105
        $region38: #{spectrogram_augmentation_kernel.1} parent=35 // pred_check_branch
          %337 = sbr.rel (%p335) target = $region40
        $region39: #{spectrogram_augmentation_kernel.1} parent=35 // pred_region
          %s338 = sand.u32 %s90, 1
          %s339 = scalar_lea.sflag [#allocation8], %s338
          %s340 = sand.u32 %s90, 1
          %s341 = smul.addr %s340, 16
          %s342 = scalar_lea.vmem [#allocation9], %s341
          %344 = dma.done %s339, 256
        $region40: #{spectrogram_augmentation_kernel.1} parent=35 // pred_fallthru
          _
      $region36: #{spectrogram_augmentation_kernel.1} parent=5 // pred_fallthru
        _
    $region6: #{spectrogram_augmentation_kernel.1} parent=1 // loop_footer
      %s38 = sadd.s32 1, %s34
    $region7: #{spectrogram_augmentation_kernel.1} parent=1 // loop_footer_branch
      %33 = sbr.rel target = $region3
    $region8: #{spectrogram_augmentation_kernel.1} parent=1 // loop_exit
      _
    %345 = vsyncpa [#allocation7], 1
    %s346 = scalar_lea.sflag [#allocation7], 1
    %347 = vsyncpa %s346, 1
    %348 = vsyncpa [#allocation8], 1
    %s349 = scalar_lea.sflag [#allocation8], 1
    %350 = vsyncpa %s349, 1

</llo_original>
